<compile_context>
chip_gen: v7x
topology: tpu7x:2x2x1
jax: 0.10.0
libtpu: 0.0.40
codegen_flags: <defaults>
</compile_context>

<pallas_src>
import functools

import jax
import jax.numpy as jnp
from jax.experimental import pallas as pl
from jax.experimental.pallas import tpu as pltpu


_LANE = 128
_DEFAULT_TILE_ROWS = 8192  # (8192, 128) f32 block = 4 MiB per operand buffer


def _cdiv(a, b):
    return -(-a // b)


def _round_up(x, m):
    return ((x + m - 1) // m) * m


# ----------------------------------------------------------------------------
# Pallas kernel: fused sqrt-diff-square + vreg-shaped running partial sums
# ----------------------------------------------------------------------------
def _amp_data_loss_kernel(pred_ref, targ_ref, acc_ref, *,
                          eps, valid_rows, tile_rows, steps_per_chunk,
                          need_mask):
    s = pl.program_id(1)

    @pl.when(s == 0)
    def _():
        acc_ref[...] = jnp.zeros_like(acc_ref)

    p = pred_ref[...].astype(jnp.float32)
    t = targ_ref[...].astype(jnp.float32)
    d = jnp.sqrt(p + eps) - jnp.sqrt(t + eps)
    sq = d * d

    if need_mask:
        # Logical tile index (may exceed the real tile count when the grid is
        # padded for core-parallel chunking; those rows mask to zero, so the
        # duplicate clamped DMA contributes nothing).
        tile = pl.program_id(0) * steps_per_chunk + s
        row0 = tile * tile_rows
        local = jax.lax.broadcasted_iota(jnp.int32, (tile_rows, 1), 0)
        sq = jnp.where(row0 + local < valid_rows, sq, 0.0)

    # Keep the per-step reduction vreg-shaped: (tr,128) -> (tr//8, 8, 128)
    # is layout-free, the sum over axis 0 is pure VALU work hidden under DMA.
    acc_ref[...] += jnp.sum(
        sq.reshape(tile_rows // 8, 8, _LANE), axis=0
    ).reshape(1, 8, _LANE)


# ----------------------------------------------------------------------------
# Wrapper
# ----------------------------------------------------------------------------
def amp_data_loss(pred, target, epsilon=1e-10, *, tile_rows=_DEFAULT_TILE_ROWS):
    """MSE(sqrt(pred + epsilon), sqrt(target + epsilon)) — mean reduction."""
    if pred.shape != target.shape:
        raise ValueError(f"shape mismatch: {pred.shape} vs {target.shape}")

    p = jnp.reshape(pred, (-1,))
    t = jnp.reshape(target, (-1,))
    n = p.shape[0]

    tile_rows = max(8, (int(tile_rows) // 8) * 8)
    rows = _cdiv(n, _LANE)

    if rows <= tile_rows:
        # Single tile covering the whole (lane-dense) slab; block == array.
        rows_arr = _round_up(rows, 8)
        tr = rows_arr
        tiles = 1
    else:
        rows_arr = rows
        tr = tile_rows
        tiles = _cdiv(rows, tr)

    total = rows_arr * _LANE
    if total != n:
        # Only when n is not already lane-aligned (or tiny): identical zero
        # padding contributes sqrt(eps) - sqrt(eps) = 0 to the sum.
        pad = total - n
        p = jnp.pad(p, (0, pad))
        t = jnp.pad(t, (0, pad))
    p2 = p.reshape(rows_arr, _LANE)
    t2 = t.reshape(rows_arr, _LANE)

    # Core-parallel chunking of the row-tile axis (v7x has 2 TensorCores;
    # harmless on single-core chips).
    num_chunks = 2 if tiles >= 2 else 1
    steps = _cdiv(tiles, num_chunks)
    need_mask = (rows_arr % tr != 0) or (num_chunks * steps != tiles)

    if num_chunks * steps == tiles:
        in_map = lambda c, s: (c * steps + s, 0)
    else:
        # Clamp out-of-range logical tiles onto the last real tile; the
        # in-kernel row mask zeroes their contribution.
        in_map = lambda c, s: (jnp.minimum(c * steps + s, tiles - 1), 0)

    kernel = functools.partial(
        _amp_data_loss_kernel,
        eps=float(epsilon),
        valid_rows=int(rows_arr),
        tile_rows=int(tr),
        steps_per_chunk=int(steps),
        need_mask=bool(need_mask),
    )

    partials = pl.pallas_call(
        kernel,
        out_shape=jax.ShapeDtypeStruct((num_chunks, 8, _LANE), jnp.float32),
        grid=(num_chunks, steps),
        in_specs=[
            pl.BlockSpec((tr, _LANE), in_map),
            pl.BlockSpec((tr, _LANE), in_map),
        ],
        # Output block is resident across the reduction (s) axis; one block
        # per parallel chunk.
        out_specs=pl.BlockSpec((1, 8, _LANE), lambda c, s: (c, 0, 0)),
        compiler_params=pltpu.CompilerParams(
            dimension_semantics=("parallel", "arbitrary"),
            vmem_limit_bytes=48 * 1024 * 1024,
        ),
    )(p2, t2)

    # Single cheap cross-lane reduce + mean normalization outside the kernel.
    return jnp.sum(partials) / n


# ----------------------------------------------------------------------------
# Pure-JAX reference (mirrors AmpDataLoss.forward)
# ----------------------------------------------------------------------------
def amp_data_loss_ref(pred, target, epsilon=1e-10):
    return jnp.mean(
        (jnp.sqrt(pred + epsilon) - jnp.sqrt(target + epsilon)) ** 2
    )


# ----------------------------------------------------------------------------
if __name__ == "__main__":
    key = jax.random.PRNGKey(0)
    k1, k2, k3, k4, k5, k6 = jax.random.split(key, 6)

    # Small "amplitude" maps: batch=2, channels=4, 16x16 (non-negative).
    pred = jax.random.uniform(k1, (2, 4, 16, 16), jnp.float32)
    target = jax.random.uniform(k2, (2, 4, 16, 16), jnp.float32)

    loss = amp_data_loss(pred, target)
    jax.block_until_ready(loss)
    ref = amp_data_loss_ref(pred, target)
    assert loss.shape == ()
    assert bool(jnp.isfinite(loss))
    assert bool(jnp.allclose(loss, ref, rtol=1e-5, atol=1e-6)), (loss, ref)

    # Ragged element count (not a multiple of 128) exercises the zero-pad path.
    pred2 = jax.random.uniform(k3, (3, 5, 7), jnp.float32)
    target2 = jax.random.uniform(k4, (3, 5, 7), jnp.float32)
    loss2 = amp_data_loss(pred2, target2)
    jax.block_until_ready(loss2)
    ref2 = amp_data_loss_ref(pred2, target2)
    assert bool(jnp.allclose(loss2, ref2, rtol=1e-5, atol=1e-6)), (loss2, ref2)

    # Small shape but tiny tile override: exercises the multi-tile path with
    # core-parallel chunking, grid padding/clamping and in-kernel masking.
    pred3 = jax.random.uniform(k5, (5, 8, 128), jnp.float32)   # 40 rows
    target3 = jax.random.uniform(k6, (5, 8, 128), jnp.float32)
    loss3 = amp_data_loss(pred3, target3, tile_rows=8)
    jax.block_until_ready(loss3)
    ref3 = amp_data_loss_ref(pred3, target3)
    assert bool(jnp.allclose(loss3, ref3, rtol=1e-5, atol=1e-6)), (loss3, ref3)

    print("KERNEL_OK")
</pallas_src>

<mosaic_0001>
module attributes {stable_mosaic.version = 11 : i64} {
  func.func @_amp_data_loss_kernel(%arg0: i32, %arg1: i32, %arg2: memref<16x128xf32, #tpu.memory_space<vmem>>, %arg3: memref<16x128xf32, #tpu.memory_space<vmem>>, %arg4: memref<1x8x128xf32, #tpu.memory_space<vmem>>) attributes {dimension_semantics = [#tpu.dimension_semantics<parallel>, #tpu.dimension_semantics<arbitrary>], iteration_bounds = array<i64: 1, 1>, scalar_prefetch = 0 : i64, scratch_operands = 0 : i64, tpu.core_type = #tpu.core_type<tc>, window_params = [{transform_indices = @transform_0, window_bounds = array<i64: 16, 128>}, {transform_indices = @transform_1, window_bounds = array<i64: 16, 128>}, {transform_indices = @transform_2, window_bounds = array<i64: 1, 8, 128>}]} {
    %c0_i32 = arith.constant 0 : i32
    %0 = arith.cmpi eq, %arg1, %c0_i32 : i32
    %1 = arith.extui %0 : i1 to i32
    %c0_i32_0 = arith.constant 0 : i32
    %2 = arith.cmpi ne, %1, %c0_i32_0 : i32
    scf.if %2 {
      %cst_12 = arith.constant 0.000000e+00 : f32
      %19 = vector.broadcast %cst_12 : f32 to vector<1x8x128xf32>
      %c0_13 = arith.constant 0 : index
      %c0_14 = arith.constant 0 : index
      %c0_15 = arith.constant 0 : index
      %20 = vector.load %arg4[%c0_13, %c0_14, %c0_15] : memref<1x8x128xf32, #tpu.memory_space<vmem>>, vector<1x8x128xf32>
      tpu.vector_store %arg4[%c0_13, %c0_14, %c0_15], %19 {strides = array<i32>} : memref<1x8x128xf32, #tpu.memory_space<vmem>>, vector<1x8x128xf32>,
    } else {
    }
    %c0 = arith.constant 0 : index
    %c0_1 = arith.constant 0 : index
    %3 = vector.load %arg2[%c0, %c0_1] : memref<16x128xf32, #tpu.memory_space<vmem>>, vector<16x128xf32>
    %c0_2 = arith.constant 0 : index
    %c0_3 = arith.constant 0 : index
    %4 = vector.load %arg3[%c0_2, %c0_3] : memref<16x128xf32, #tpu.memory_space<vmem>>, vector<16x128xf32>
    %cst = arith.constant 1.000000e-10 : f32
    %5 = vector.broadcast %cst : f32 to vector<16x128xf32>
    %6 = arith.addf %3, %5 : vector<16x128xf32>
    %7 = math.sqrt %6 : vector<16x128xf32>
    %cst_4 = arith.constant 1.000000e-10 : f32
    %8 = vector.broadcast %cst_4 : f32 to vector<16x128xf32>
    %9 = arith.addf %4, %8 : vector<16x128xf32>
    %10 = math.sqrt %9 : vector<16x128xf32>
    %11 = arith.subf %7, %10 : vector<16x128xf32>
    %12 = arith.mulf %11, %11 : vector<16x128xf32>
    %c0_5 = arith.constant 0 : index
    %c0_6 = arith.constant 0 : index
    %c0_7 = arith.constant 0 : index
    %13 = vector.load %arg4[%c0_5, %c0_6, %c0_7] : memref<1x8x128xf32, #tpu.memory_space<vmem>>, vector<1x8x128xf32>
    %14 = vector.shape_cast %12 : vector<16x128xf32> to vector<2x8x128xf32>
    %cst_8 = arith.constant dense<0.000000e+00> : vector<8x128xf32>
    %15 = vector.multi_reduction <add>, %14, %cst_8 [0] : vector<2x8x128xf32> to vector<8x128xf32>
    %16 = vector.shape_cast %15 : vector<8x128xf32> to vector<1x8x128xf32>
    %17 = arith.addf %13, %16 : vector<1x8x128xf32>
    %c0_9 = arith.constant 0 : index
    %c0_10 = arith.constant 0 : index
    %c0_11 = arith.constant 0 : index
    %18 = vector.load %arg4[%c0_9, %c0_10, %c0_11] : memref<1x8x128xf32, #tpu.memory_space<vmem>>, vector<1x8x128xf32>
    tpu.vector_store %arg4[%c0_9, %c0_10, %c0_11], %17 {strides = array<i32>} : memref<1x8x128xf32, #tpu.memory_space<vmem>>, vector<1x8x128xf32>,
    return
  }
  func.func @transform_0(%arg0: i32, %arg1: i32) -> (i32, i32) {
    %c1_i32 = arith.constant 1 : i32
    %0 = arith.muli %arg0, %c1_i32 : i32
    %1 = arith.addi %0, %arg1 : i32
    %c0_i32 = arith.constant 0 : i32
    %c0_i32_0 = arith.constant 0 : i32
    return %1, %c0_i32 : i32, i32
  }
  func.func @transform_1(%arg0: i32, %arg1: i32) -> (i32, i32) {
    %c1_i32 = arith.constant 1 : i32
    %0 = arith.muli %arg0, %c1_i32 : i32
    %1 = arith.addi %0, %arg1 : i32
    %c0_i32 = arith.constant 0 : i32
    %c0_i32_0 = arith.constant 0 : i32
    return %1, %c0_i32 : i32, i32
  }
  func.func @transform_2(%arg0: i32, %arg1: i32) -> (i32, i32, i32) {
    %c0_i32 = arith.constant 0 : i32
    %c0_i32_0 = arith.constant 0 : i32
    %c0_i32_1 = arith.constant 0 : i32
    return %arg0, %c0_i32, %c0_i32_0 : i32, i32, i32
  }
}

</mosaic_0001>

<llo_original>
// kernel: tpu_custom_call.1
$region0: #{tpu_custom_call.1}
  #allocation0 [shape = 'u32[]', space=smem, size = 0x4, offset = 0x4, fixed_abs, tag = 'smem constant byte address 0x4 - core index']
  #allocation1 [shape = 'u32[144,128]{1,0:T(1,128)}', space=vmem, size = 0x12000, scoped, tag = 'internal scratch']
  %s0 = inlined_call_operand.hbm [shape: f32[16,128], index: 0, kind: input, shape index: {}]
  %s1 = inlined_call_operand.hbm [shape: f32[16,128], index: 1, kind: input, shape index: {}]
  %s2 = inlined_call_operand.hbm [shape: f32[1,8,128], index: 2, kind: output, shape index: {}]
  %s3 = sld [smem:[#allocation0]]
  $region30: #{tpu_custom_call.1} parent=0
    _
  %s5 = ssub.s32 1, %s3
  %s6 = scalar_select 0, %s5, %s3
  $region1: #{tpu_custom_call.1} parent=0
    #allocation2 [shape = 'u8[8192]{0}', space=vmem, size = 0x2000, scoped, tag = 'input window, operand 0, single buffered']
    #allocation3 [shape = 's32[1]{0}', space=sflag, size = 0x4, scoped, tag = 'scoped memory for tpu_custom_call.1']
    #allocation4 [shape = 's32[1]{0}', space=sflag, size = 0x4, scoped, tag = 'scoped memory for tpu_custom_call.1']
    #allocation5 [shape = 'u8[8192]{0}', space=vmem, size = 0x2000, scoped, tag = 'input window, operand 1, single buffered']
    #allocation6 [shape = 's32[1]{0}', space=sflag, size = 0x4, scoped, tag = 'scoped memory for tpu_custom_call.1']
    #allocation7 [shape = 'u8[4096]{0}', space=vmem, size = 0x1000, scoped, tag = 'output window, operand 0, single buffered']
    %7 = vsyncpa [#allocation3], 0
    %8 = vsyncpa [#allocation6], 0
    %9 = vsyncpa [#allocation4], 0
    // Predicated region
    $region2: #{tpu_custom_call.1} parent=1 // pred_check
      _
    $region3: #{tpu_custom_call.1} parent=1 // pred_check_branch
      %11 = sbr.rel (0) target = $region5
    $region4: #{tpu_custom_call.1} parent=1 // pred_region
      %s12 = sadd.s32 0, 0
      %s13 = smul.u32 2, %s12
      %s15 = ssub.s32 256, 256
      %16 = vsyncadd [#allocation3], %s15
      %s17 = smul.addr %s13, 128
      %s18 = scalar_lea.hbm %s0, %s17
      %s19 = sshll.u32 [#allocation2], 4
      %s20 = int_to_ptr.vmem [resolvable:$true] %s19
      %25 = dma.hbm_to_vmem [thread:$0]  %s18, 256, %s20, [#allocation3], 128, 128, 8
    $region5: #{tpu_custom_call.1} parent=1 // pred_fallthru
      _
    // Predicated region
    $region6: #{tpu_custom_call.1} parent=1 // pred_check
      _
    $region7: #{tpu_custom_call.1} parent=1 // pred_check_branch
      %27 = sbr.rel (0) target = $region9
    $region8: #{tpu_custom_call.1} parent=1 // pred_region
      %s28 = sadd.s32 0, 0
      %s29 = smul.u32 2, %s28
      %s31 = ssub.s32 256, 256
      %32 = vsyncadd [#allocation6], %s31
      %s33 = smul.addr %s29, 128
      %s34 = scalar_lea.hbm %s1, %s33
      %s35 = sshll.u32 [#allocation5], 4
      %s36 = int_to_ptr.vmem [resolvable:$true] %s35
      %41 = dma.hbm_to_vmem [thread:$0]  %s34, 256, %s36, [#allocation6], 128, 128, 8
    $region9: #{tpu_custom_call.1} parent=1 // pred_fallthru
      _
    // Predicated region
    $region10: #{tpu_custom_call.1} parent=1 // pred_check
      _
    $region11: #{tpu_custom_call.1} parent=1 // pred_check_branch
      %43 = sbr.rel (0) target = $region13
    $region12: #{tpu_custom_call.1} parent=1 // pred_region
      %44 = dma.done [#allocation3], 256
    $region13: #{tpu_custom_call.1} parent=1 // pred_fallthru
      _
    // Predicated region
    $region14: #{tpu_custom_call.1} parent=1 // pred_check
      _
    $region15: #{tpu_custom_call.1} parent=1 // pred_check_branch
      %46 = sbr.rel (0) target = $region17
    $region16: #{tpu_custom_call.1} parent=1 // pred_region
      %47 = dma.done [#allocation6], 256
    $region17: #{tpu_custom_call.1} parent=1 // pred_fallthru
      _
    %s48 = sadd.s32 0, 0
    %s49 = smul.u32 2, %s48
    %s50 = sadd.s32 0, 0
    %s51 = smul.u32 2, %s50
    %p52 = scmp.eq.s32.totalorder 0, 0
    // Predicated region
    $region18: #{tpu_custom_call.1} parent=1 // pred_check
      %p53 = pneg %p52
    $region19: #{tpu_custom_call.1} parent=1 // pred_check_branch
      %55 = sbr.rel (%p53) target = $region21
    $region20: #{tpu_custom_call.1} parent=1 // pred_region
      %56 = vst [vmem:[#allocation7] sm:$0xff] 0.0
    $region21: #{tpu_custom_call.1} parent=1 // pred_fallthru
      _
    %v57 = vld [vmem:[#allocation2] sm:$0xff]
    %v58 = vld [vmem:[#allocation2 + $0x8] sm:$0xff]
    %v59 = vld [vmem:[#allocation5] sm:$0xff]
    %v60 = vld [vmem:[#allocation5 + $0x8] sm:$0xff]
    %v61 = vadd.f32 %v57, 1e-10
    %v62 = vadd.f32 %v58, 1e-10
    %v63 = vrsqrt.pop %v61
    %v64 = vmul.f32 %v61, %v63
    %vm65 = vcmp.eq.f32.partialorder %v61, inf
    %v66 = vsel %vm65, %v61, %v64
    %vm67 = vcmp.eq.f32.partialorder %v61, 0.0
    %v68 = vand.u32 %v61, 2147483648
    %v69 = vsel %vm67, %v68, %v66
    %v70 = vrsqrt.pop %v62
    %v71 = vmul.f32 %v62, %v70
    %vm72 = vcmp.eq.f32.partialorder %v62, inf
    %v73 = vsel %vm72, %v62, %v71
    %vm74 = vcmp.eq.f32.partialorder %v62, 0.0
    %v75 = vand.u32 %v62, 2147483648
    %v76 = vsel %vm74, %v75, %v73
    %v77 = vadd.f32 %v59, 1e-10
    %v78 = vadd.f32 %v60, 1e-10
    %v79 = vrsqrt.pop %v77
    %v80 = vmul.f32 %v77, %v79
    %vm81 = vcmp.eq.f32.partialorder %v77, inf
    %v82 = vsel %vm81, %v77, %v80
    %vm83 = vcmp.eq.f32.partialorder %v77, 0.0
    %v84 = vand.u32 %v77, 2147483648
    %v85 = vsel %vm83, %v84, %v82
    %v86 = vrsqrt.pop %v78
    %v87 = vmul.f32 %v78, %v86
    %vm88 = vcmp.eq.f32.partialorder %v78, inf
    %v89 = vsel %vm88, %v78, %v87
    %vm90 = vcmp.eq.f32.partialorder %v78, 0.0
    %v91 = vand.u32 %v78, 2147483648
    %v92 = vsel %vm90, %v91, %v89
    %v93 = vsub.f32 %v69, %v85
    %v94 = vsub.f32 %v76, %v92
    %v95 = vmul.f32 %v93, %v93
    %v96 = vmul.f32 %v94, %v94
    %v97 = vld [vmem:[#allocation7] sm:$0xff]
    %v98 = vadd.f32 %v95, %v96
    %v99 = vadd.f32 %v97, %v98
    %100 = vst [vmem:[#allocation7] sm:$0xff] %v99
    // Predicated region
    $region22: #{tpu_custom_call.1} parent=1 // pred_check
      _
    $region23: #{tpu_custom_call.1} parent=1 // pred_check_branch
      %102 = sbr.rel (0) target = $region25
    $region24: #{tpu_custom_call.1} parent=1 // pred_region
      %s104 = ssub.s32 128, 128
      %105 = vsyncadd [#allocation4], %s104
      %s107 = sshll.u32 [#allocation7], 4
      %s108 = int_to_ptr.vmem [resolvable:$true] %s107
      %110 = dma.vmem_to_hbm [thread:$0]  %s108, 128, %s2, [#allocation4]
    $region25: #{tpu_custom_call.1} parent=1 // pred_fallthru
      _
    // Predicated region
    $region26: #{tpu_custom_call.1} parent=1 // pred_check
      _
    $region27: #{tpu_custom_call.1} parent=1 // pred_check_branch
      %112 = sbr.rel (0) target = $region29
    $region28: #{tpu_custom_call.1} parent=1 // pred_region
      %113 = dma.done [#allocation4], 128
    $region29: #{tpu_custom_call.1} parent=1 // pred_fallthru
      _
    %114 = vsyncpa [#allocation3], 1
    %115 = vsyncpa [#allocation6], 1
    %116 = vsyncpa [#allocation4], 1

</llo_original>
